<compile_context>
chip_gen: v6e
topology: v6e:2x2x1
jax: 0.10.0
libtpu: 0.0.40
codegen_flags: <defaults>
</compile_context>

<pallas_src>
import functools

import jax
import jax.numpy as jnp
from jax.experimental import pallas as pl
from jax.experimental.pallas import tpu as pltpu

_LANE = 128


def _cdiv(a: int, b: int) -> int:
    return -(-a // b)


def _round_up(a: int, b: int) -> int:
    return _cdiv(a, b) * b


def _vmem_capacity_bytes() -> int:
    try:
        return int(pltpu.get_tpu_info().vmem_capacity_bytes)
    except Exception:
        return 64 * 1024 * 1024  # conservative fallback: v7x per-TC VMEM


def _sublane_tile(dtype) -> int:
    # Native second-minor tile: 8 rows for 32-bit, 16 for 16-bit, 32 for 8-bit.
    return max(8, 32 // jnp.dtype(dtype).itemsize)


# ----------------------------------------------------------------------------
# Kernels: accumulate per-row sum(t), sum(p), sum(p*t) over feature tiles.
# ----------------------------------------------------------------------------

def _gd_sums_3d_kernel(p_ref, t_ref, st_ref, sp_ref, spt_ref, *,
                       s_rows: int, cols: int, need_mask: bool):
    """Sublane-dense path. Blocks are (1, S, 128); grid = (n, K).

    Axis 0 ("parallel") is the batch row (sharded across TensorCores on
    megacore chips), axis 1 ("arbitrary") is the reduction over 128-lane
    column chunks.  Output blocks are (1, 1, 128) lane-partials whose index
    is constant along k, so they stay VMEM-resident across the reduction.
    """
    k = pl.program_id(1)

    @pl.when(k == 0)
    def _init():
        st_ref[...] = jnp.zeros_like(st_ref)
        sp_ref[...] = jnp.zeros_like(sp_ref)
        spt_ref[...] = jnp.zeros_like(spt_ref)

    p = p_ref[...].astype(jnp.float32)   # (1, S, 128)
    t = t_ref[...].astype(jnp.float32)   # (1, S, 128)

    if need_mask:  # static: only emitted when the last chunk is partial
        row = jax.lax.broadcasted_iota(jnp.int32, p.shape, 1) + k * s_rows
        valid = row < cols
        p = jnp.where(valid, p, jnp.float32(0.0))
        t = jnp.where(valid, t, jnp.float32(0.0))

    st_ref[...] += jnp.sum(t, axis=1, keepdims=True)       # (1, 1, 128)
    sp_ref[...] += jnp.sum(p, axis=1, keepdims=True)
    spt_ref[...] += jnp.sum(p * t, axis=1, keepdims=True)


def _gd_sums_2d_kernel(p_ref, t_ref, st_ref, sp_ref, spt_ref, *,
                       tf: int, feat: int, need_mask: bool):
    """Fallback path for feat % 128 != 0. Blocks are (n, TF); grid = (K,)."""
    k = pl.program_id(0)

    @pl.when(k == 0)
    def _init():
        st_ref[...] = jnp.zeros_like(st_ref)
        sp_ref[...] = jnp.zeros_like(sp_ref)
        spt_ref[...] = jnp.zeros_like(spt_ref)

    p = p_ref[...].astype(jnp.float32)   # (n, TF)
    t = t_ref[...].astype(jnp.float32)   # (n, TF)

    if need_mask:  # static: mask the out-of-bounds tail of BOTH p and t
        col = jax.lax.broadcasted_iota(jnp.int32, p.shape, 1) + k * tf
        valid = col < feat
        p = jnp.where(valid, p, jnp.float32(0.0))
        t = jnp.where(valid, t, jnp.float32(0.0))

    st_ref[...] += jnp.sum(t, axis=1, keepdims=True)        # (n, 1)
    sp_ref[...] += jnp.sum(p, axis=1, keepdims=True)
    spt_ref[...] += jnp.sum(p * t, axis=1, keepdims=True)


# ----------------------------------------------------------------------------
# Wrappers around pallas_call (tile sizing + specs)
# ----------------------------------------------------------------------------

def _row_sums_aligned(p2, t2, feat, ws_budget, vmem_cap):
    """feat % 128 == 0: sublane-dense (n, cols, 128) layout."""
    n = p2.shape[0]
    cols = feat // _LANE
    p3 = p2.reshape(n, cols, _LANE)   # free, contiguous reshape (no HBM copy)
    t3 = t2.reshape(n, cols, _LANE)

    isz_p = jnp.dtype(p2.dtype).itemsize
    isz_t = jnp.dtype(t2.dtype).itemsize
    s_align = max(_sublane_tile(p2.dtype), _sublane_tile(t2.dtype))

    # Physical VMEM per 128-lane row of the block:
    #   2 pipeline buffers per input (native dtype) + 3 f32 in-kernel temps.
    row_bytes = _LANE * (2 * (isz_p + isz_t) + 3 * 4)
    s_budget = max(1, ws_budget // row_bytes)

    if cols <= max(s_align, s_budget):
        s_rows, k_steps, need_mask = cols, 1, False        # single full block
    else:
        s_rows = max(s_align, (s_budget // s_align) * s_align)
        s_rows = min(s_rows, (cols // s_align) * s_align)
        k_steps = _cdiv(cols, s_rows)
        need_mask = (cols % s_rows) != 0                   # partial last tile

    ws = s_rows * row_bytes + 3 * n * _LANE * 4
    vmem_limit = int(min(vmem_cap - (8 << 20), max(16 << 20, ws + (12 << 20))))

    out_shape = jax.ShapeDtypeStruct((n, 1, _LANE), jnp.float32)
    out_spec = pl.BlockSpec((1, 1, _LANE), lambda i, k: (i, 0, 0))
    in_spec = pl.BlockSpec((1, s_rows, _LANE), lambda i, k: (i, k, 0))

    kernel = functools.partial(_gd_sums_3d_kernel, s_rows=s_rows, cols=cols,
                               need_mask=need_mask)
    st, sp, spt = pl.pallas_call(
        kernel,
        out_shape=(out_shape, out_shape, out_shape),
        grid_spec=pltpu.PrefetchScalarGridSpec(
            num_scalar_prefetch=0,
            grid=(n, k_steps),
            in_specs=[in_spec, in_spec],
            out_specs=(out_spec, out_spec, out_spec),
        ),
        compiler_params=pltpu.CompilerParams(
            dimension_semantics=("parallel", "arbitrary"),
            vmem_limit_bytes=vmem_limit,
        ),
    )(p3, t3)

    return (jnp.sum(st, axis=(1, 2)),
            jnp.sum(sp, axis=(1, 2)),
            jnp.sum(spt, axis=(1, 2)))


def _row_sums_ragged(p2, t2, feat, ws_budget, vmem_cap):
    """feat % 128 != 0: (n, feat) layout, in-kernel tail masking (no jnp.pad)."""
    n = p2.shape[0]
    isz_p = jnp.dtype(p2.dtype).itemsize
    isz_t = jnp.dtype(t2.dtype).itemsize

    # PHYSICAL bytes per 128-lane column group: the second-minor dim n pads
    # up to each dtype's native sublane tile; the 3 f32 temporaries pad to 8.
    n_pad_p = _round_up(n, _sublane_tile(p2.dtype))
    n_pad_t = _round_up(n, _sublane_tile(t2.dtype))
    n_pad_f = _round_up(n, 8)
    col_bytes = _LANE * (2 * (n_pad_p * isz_p + n_pad_t * isz_t)
                         + 3 * n_pad_f * 4)

    cols = _cdiv(feat, _LANE)
    tf_cols = max(1, ws_budget // col_bytes)
    if cols <= tf_cols:
        tf, k_steps, need_mask = feat, 1, False            # single full block
    else:
        tf = tf_cols * _LANE
        k_steps = _cdiv(feat, tf)
        need_mask = (feat % tf) != 0

    ws = _cdiv(tf, _LANE) * col_bytes
    vmem_limit = int(min(vmem_cap - (8 << 20), max(16 << 20, ws + (12 << 20))))

    out_shape = jax.ShapeDtypeStruct((n, 1), jnp.float32)
    out_spec = pl.BlockSpec((n, 1), lambda k: (0, 0))
    in_spec = pl.BlockSpec((n, tf), lambda k: (0, k))

    kernel = functools.partial(_gd_sums_2d_kernel, tf=tf, feat=feat,
                               need_mask=need_mask)
    st, sp, spt = pl.pallas_call(
        kernel,
        out_shape=(out_shape, out_shape, out_shape),
        grid_spec=pltpu.PrefetchScalarGridSpec(
            num_scalar_prefetch=0,
            grid=(k_steps,),
            in_specs=[in_spec, in_spec],
            out_specs=(out_spec, out_spec, out_spec),
        ),
        compiler_params=pltpu.CompilerParams(
            dimension_semantics=("arbitrary",),
            vmem_limit_bytes=vmem_limit,
        ),
    )(p2, t2)

    return st[:, 0], sp[:, 0], spt[:, 0]


# ----------------------------------------------------------------------------
# Public entry point
# ----------------------------------------------------------------------------

def generalized_dice(y_pred: jax.Array, y_true: jax.Array, *,
                     ws_budget_bytes: int | None = None) -> jax.Array:
    assert y_pred.shape == y_true.shape, "predict & target shape don't match"
    n = y_pred.shape[0]
    p2 = y_pred.reshape(n, -1)   # native dtype — no f32 upcast copy in HBM
    t2 = y_true.reshape(n, -1)
    feat = p2.shape[1]

    vmem_cap = _vmem_capacity_bytes()
    if ws_budget_bytes is None:
        # Pipelined working set (2 inputs x 2 buffers + f32 temps): at most
        # ~40% of this generation's VMEM, capped at 24 MiB (plenty to sit on
        # the HBM roofline) so v7x's 64 MiB/TC keeps generous headroom.
        ws_budget_bytes = max(2 << 20,
                              min(24 << 20, int(vmem_cap * 0.4) - (4 << 20)))

    if feat % _LANE == 0:
        st, sp, spt = _row_sums_aligned(p2, t2, feat, ws_budget_bytes, vmem_cap)
    else:
        st, sp, spt = _row_sums_ragged(p2, t2, feat, ws_budget_bytes, vmem_cap)

    # Tiny finalize in plain JAX — matches the PyTorch reference exactly,
    # including the GLOBAL .sum() on the (1-p)/(1-t) union terms.
    # NOTE: like the reference, rows with all-zero / all-one targets produce
    # inf/nan weights (division by zero) — behavior intentionally preserved.
    F = float(feat)                      # true feature count (no padding)
    snn = F - sp - st + spt              # sum((1-p)(1-t)) per row, algebraically
    w_p = 1.0 / (st * st)
    w_n = 1.0 / ((F - st) * (F - st))
    intersection = w_p * spt + w_n * snn
    total_np = n * F - jnp.sum(sp)       # sum over ALL elems of (1 - y_pred)
    total_nt = n * F - jnp.sum(st)       # sum over ALL elems of (1 - y_true)
    union = w_p * (sp + st) + w_n * (total_np + total_nt)
    loss = 1.0 - 2.0 * (intersection / union)
    return jnp.mean(loss)


def generalized_dice_ref(y_pred, y_true):
    """Pure-JAX reference mirroring the PyTorch forward exactly."""
    n = y_pred.shape[0]
    p = y_pred.reshape(n, -1).astype(jnp.float32)
    t = y_true.reshape(n, -1).astype(jnp.float32)
    w_p = 1.0 / jnp.sum(t, axis=1) ** 2
    w_n = 1.0 / jnp.sum(1.0 - t, axis=1) ** 2
    intersection = (w_p * jnp.sum(p * t, axis=1)
                    + w_n * jnp.sum((1 - p) * (1 - t), axis=1))
    union = w_p * (jnp.sum(p, axis=1) + jnp.sum(t, axis=1)) + w_n * (
        jnp.sum(1 - p) + jnp.sum(1 - t))
    loss = 1.0 - 2.0 * (intersection / union)
    return jnp.mean(loss)


if __name__ == "__main__":
    key = jax.random.PRNGKey(0)
    k1, k2, k3, k4, k5, k6, k7, k8 = jax.random.split(key, 8)

    # Case 1: lane-aligned NCHW input -> sublane-dense (n, cols, 128) path.
    yp1 = jax.random.uniform(k1, (2, 4, 16, 16), dtype=jnp.float32)
    yt1 = (jax.random.uniform(k2, (2, 4, 16, 16)) > 0.5).astype(jnp.float32)
    l1 = jax.block_until_ready(generalized_dice(yp1, yt1))
    r1 = generalized_dice_ref(yp1, yt1)
    assert jnp.allclose(l1, r1, rtol=1e-5, atol=1e-5), (l1, r1)

    # Case 2: ragged feature count (969) -> 2D fallback; tiny budget forces a
    # multi-tile reduction + in-kernel tail masking (no HBM padding copy).
    yp2 = jax.random.uniform(k3, (3, 3, 17, 19), dtype=jnp.float32)
    yt2 = (jax.random.uniform(k4, (3, 3, 17, 19)) > 0.5).astype(jnp.float32)
    l2 = jax.block_until_ready(
        generalized_dice(yp2, yt2, ws_budget_bytes=32 * 1024))
    r2 = generalized_dice_ref(yp2, yt2)
    assert jnp.allclose(l2, r2, rtol=1e-5, atol=1e-5), (l2, r2)

    # Case 3: lane-aligned, many column chunks, small budget -> multi-tile
    # aligned path with a partial (masked) last tile.
    yp3 = jax.random.uniform(k5, (2, 8, 32, 64), dtype=jnp.float32)
    yt3 = (jax.random.uniform(k6, (2, 8, 32, 64)) > 0.5).astype(jnp.float32)
    l3 = jax.block_until_ready(
        generalized_dice(yp3, yt3, ws_budget_bytes=90 * 1024))
    r3 = generalized_dice_ref(yp3, yt3)
    assert jnp.allclose(l3, r3, rtol=1e-5, atol=1e-5), (l3, r3)

    # Case 4: bf16 predictions stay in native dtype end-to-end (cast to f32
    # only inside the kernel, per block).
    yp4 = jax.random.uniform(k7, (2, 8, 16, 16), dtype=jnp.float32).astype(jnp.bfloat16)
    yt4 = (jax.random.uniform(k8, (2, 8, 16, 16)) > 0.5).astype(jnp.float32)
    l4 = jax.block_until_ready(generalized_dice(yp4, yt4))
    r4 = generalized_dice_ref(yp4, yt4)
    assert jnp.allclose(l4, r4, rtol=1e-4, atol=1e-4), (l4, r4)

    print("KERNEL_OK")
</pallas_src>

<mosaic_0001>
module attributes {stable_mosaic.version = 11 : i64} {
  func.func @_gd_sums_3d_kernel(%arg0: i32, %arg1: i32, %arg2: memref<1x8x128xf32, #tpu.memory_space<vmem>>, %arg3: memref<1x8x128xf32, #tpu.memory_space<vmem>>, %arg4: memref<1x1x128xf32, #tpu.memory_space<vmem>>, %arg5: memref<1x1x128xf32, #tpu.memory_space<vmem>>, %arg6: memref<1x1x128xf32, #tpu.memory_space<vmem>>) attributes {dimension_semantics = [#tpu.dimension_semantics<parallel>, #tpu.dimension_semantics<arbitrary>], iteration_bounds = array<i64: 2, 1>, scalar_prefetch = 0 : i64, scratch_operands = 0 : i64, tpu.core_type = #tpu.core_type<tc>, window_params = [{transform_indices = @transform_0, window_bounds = array<i64: 1, 8, 128>}, {transform_indices = @transform_1, window_bounds = array<i64: 1, 8, 128>}, {transform_indices = @transform_2, window_bounds = array<i64: 1, 1, 128>}, {transform_indices = @transform_3, window_bounds = array<i64: 1, 1, 128>}, {transform_indices = @transform_4, window_bounds = array<i64: 1, 1, 128>}]} {
    %c0_i32 = arith.constant 0 : i32
    %0 = arith.cmpi eq, %arg1, %c0_i32 : i32
    %1 = arith.extui %0 : i1 to i32
    %c0_i32_0 = arith.constant 0 : i32
    %2 = arith.cmpi ne, %1, %c0_i32_0 : i32
    scf.if %2 {
      %cst_26 = arith.constant 0.000000e+00 : f32
      %21 = vector.broadcast %cst_26 : f32 to vector<1x1x128xf32>
      %c0_27 = arith.constant 0 : index
      %c0_28 = arith.constant 0 : index
      %c0_29 = arith.constant 0 : index
      %22 = vector.load %arg4[%c0_27, %c0_28, %c0_29] : memref<1x1x128xf32, #tpu.memory_space<vmem>>, vector<1x1x128xf32>
      tpu.vector_store %arg4[%c0_27, %c0_28, %c0_29], %21 {strides = array<i32>} : memref<1x1x128xf32, #tpu.memory_space<vmem>>, vector<1x1x128xf32>,
      %cst_30 = arith.constant 0.000000e+00 : f32
      %23 = vector.broadcast %cst_30 : f32 to vector<1x1x128xf32>
      %c0_31 = arith.constant 0 : index
      %c0_32 = arith.constant 0 : index
      %c0_33 = arith.constant 0 : index
      %24 = vector.load %arg5[%c0_31, %c0_32, %c0_33] : memref<1x1x128xf32, #tpu.memory_space<vmem>>, vector<1x1x128xf32>
      tpu.vector_store %arg5[%c0_31, %c0_32, %c0_33], %23 {strides = array<i32>} : memref<1x1x128xf32, #tpu.memory_space<vmem>>, vector<1x1x128xf32>,
      %cst_34 = arith.constant 0.000000e+00 : f32
      %25 = vector.broadcast %cst_34 : f32 to vector<1x1x128xf32>
      %c0_35 = arith.constant 0 : index
      %c0_36 = arith.constant 0 : index
      %c0_37 = arith.constant 0 : index
      %26 = vector.load %arg6[%c0_35, %c0_36, %c0_37] : memref<1x1x128xf32, #tpu.memory_space<vmem>>, vector<1x1x128xf32>
      tpu.vector_store %arg6[%c0_35, %c0_36, %c0_37], %25 {strides = array<i32>} : memref<1x1x128xf32, #tpu.memory_space<vmem>>, vector<1x1x128xf32>,
    } else {
    }
    %c0 = arith.constant 0 : index
    %c0_1 = arith.constant 0 : index
    %c0_2 = arith.constant 0 : index
    %3 = vector.load %arg2[%c0, %c0_1, %c0_2] : memref<1x8x128xf32, #tpu.memory_space<vmem>>, vector<1x8x128xf32>
    %c0_3 = arith.constant 0 : index
    %c0_4 = arith.constant 0 : index
    %c0_5 = arith.constant 0 : index
    %4 = vector.load %arg3[%c0_3, %c0_4, %c0_5] : memref<1x8x128xf32, #tpu.memory_space<vmem>>, vector<1x8x128xf32>
    %c0_6 = arith.constant 0 : index
    %c0_7 = arith.constant 0 : index
    %c0_8 = arith.constant 0 : index
    %5 = vector.load %arg4[%c0_6, %c0_7, %c0_8] : memref<1x1x128xf32, #tpu.memory_space<vmem>>, vector<1x1x128xf32>
    %cst = arith.constant dense<0.000000e+00> : vector<1x128xf32>
    %6 = vector.multi_reduction <add>, %4, %cst [1] : vector<1x8x128xf32> to vector<1x128xf32>
    %7 = vector.shape_cast %6 : vector<1x128xf32> to vector<1x1x128xf32>
    %8 = arith.addf %5, %7 : vector<1x1x128xf32>
    %c0_9 = arith.constant 0 : index
    %c0_10 = arith.constant 0 : index
    %c0_11 = arith.constant 0 : index
    %9 = vector.load %arg4[%c0_9, %c0_10, %c0_11] : memref<1x1x128xf32, #tpu.memory_space<vmem>>, vector<1x1x128xf32>
    tpu.vector_store %arg4[%c0_9, %c0_10, %c0_11], %8 {strides = array<i32>} : memref<1x1x128xf32, #tpu.memory_space<vmem>>, vector<1x1x128xf32>,
    %c0_12 = arith.constant 0 : index
    %c0_13 = arith.constant 0 : index
    %c0_14 = arith.constant 0 : index
    %10 = vector.load %arg5[%c0_12, %c0_13, %c0_14] : memref<1x1x128xf32, #tpu.memory_space<vmem>>, vector<1x1x128xf32>
    %cst_15 = arith.constant dense<0.000000e+00> : vector<1x128xf32>
    %11 = vector.multi_reduction <add>, %3, %cst_15 [1] : vector<1x8x128xf32> to vector<1x128xf32>
    %12 = vector.shape_cast %11 : vector<1x128xf32> to vector<1x1x128xf32>
    %13 = arith.addf %10, %12 : vector<1x1x128xf32>
    %c0_16 = arith.constant 0 : index
    %c0_17 = arith.constant 0 : index
    %c0_18 = arith.constant 0 : index
    %14 = vector.load %arg5[%c0_16, %c0_17, %c0_18] : memref<1x1x128xf32, #tpu.memory_space<vmem>>, vector<1x1x128xf32>
    tpu.vector_store %arg5[%c0_16, %c0_17, %c0_18], %13 {strides = array<i32>} : memref<1x1x128xf32, #tpu.memory_space<vmem>>, vector<1x1x128xf32>,
    %c0_19 = arith.constant 0 : index
    %c0_20 = arith.constant 0 : index
    %c0_21 = arith.constant 0 : index
    %15 = vector.load %arg6[%c0_19, %c0_20, %c0_21] : memref<1x1x128xf32, #tpu.memory_space<vmem>>, vector<1x1x128xf32>
    %16 = arith.mulf %3, %4 : vector<1x8x128xf32>
    %cst_22 = arith.constant dense<0.000000e+00> : vector<1x128xf32>
    %17 = vector.multi_reduction <add>, %16, %cst_22 [1] : vector<1x8x128xf32> to vector<1x128xf32>
    %18 = vector.shape_cast %17 : vector<1x128xf32> to vector<1x1x128xf32>
    %19 = arith.addf %15, %18 : vector<1x1x128xf32>
    %c0_23 = arith.constant 0 : index
    %c0_24 = arith.constant 0 : index
    %c0_25 = arith.constant 0 : index
    %20 = vector.load %arg6[%c0_23, %c0_24, %c0_25] : memref<1x1x128xf32, #tpu.memory_space<vmem>>, vector<1x1x128xf32>
    tpu.vector_store %arg6[%c0_23, %c0_24, %c0_25], %19 {strides = array<i32>} : memref<1x1x128xf32, #tpu.memory_space<vmem>>, vector<1x1x128xf32>,
    return
  }
  func.func @transform_0(%arg0: i32, %arg1: i32) -> (i32, i32, i32) {
    %c0_i32 = arith.constant 0 : i32
    %c0_i32_0 = arith.constant 0 : i32
    return %arg0, %arg1, %c0_i32 : i32, i32, i32
  }
  func.func @transform_1(%arg0: i32, %arg1: i32) -> (i32, i32, i32) {
    %c0_i32 = arith.constant 0 : i32
    %c0_i32_0 = arith.constant 0 : i32
    return %arg0, %arg1, %c0_i32 : i32, i32, i32
  }
  func.func @transform_2(%arg0: i32, %arg1: i32) -> (i32, i32, i32) {
    %c0_i32 = arith.constant 0 : i32
    %c0_i32_0 = arith.constant 0 : i32
    %c0_i32_1 = arith.constant 0 : i32
    return %arg0, %c0_i32, %c0_i32_0 : i32, i32, i32
  }
  func.func @transform_3(%arg0: i32, %arg1: i32) -> (i32, i32, i32) {
    %c0_i32 = arith.constant 0 : i32
    %c0_i32_0 = arith.constant 0 : i32
    %c0_i32_1 = arith.constant 0 : i32
    return %arg0, %c0_i32, %c0_i32_0 : i32, i32, i32
  }
  func.func @transform_4(%arg0: i32, %arg1: i32) -> (i32, i32, i32) {
    %c0_i32 = arith.constant 0 : i32
    %c0_i32_0 = arith.constant 0 : i32
    %c0_i32_1 = arith.constant 0 : i32
    return %arg0, %c0_i32, %c0_i32_0 : i32, i32, i32
  }
}

</mosaic_0001>

<llo_original>
// kernel: tpu_custom_call.1
$region0: #{tpu_custom_call.1}
  #allocation0 [shape = 'u32[]', space=smem, size = 0x4, offset = 0x4, fixed_abs, tag = 'smem constant byte address 0x4 - core index']
  #allocation1 [shape = 'u32[144,128]{1,0:T(1,128)}', space=vmem, size = 0x12000, scoped, tag = 'internal scratch']
  %s0 = inlined_call_operand.hbm [shape: f32[2,8,128], index: 0, kind: input, shape index: {}]
  %s1 = inlined_call_operand.hbm [shape: f32[2,8,128], index: 1, kind: input, shape index: {}]
  %s2 = inlined_call_operand.hbm [shape: f32[2,1,128], index: 2, kind: output, shape index: {0}]
  %s3 = inlined_call_operand.hbm [shape: f32[2,1,128], index: 3, kind: output, shape index: {1}]
  %s4 = inlined_call_operand.hbm [shape: f32[2,1,128], index: 4, kind: output, shape index: {2}]
  %5 = xla_tuple %s2, %s3, %s4
  %s6 = sld [smem:[#allocation0]]
  $region69: #{tpu_custom_call.1} parent=0
    _
  %s8 = ssub.s32 1, %s6
  %s9 = scalar_select 0, %s8, %s6
  $region1: #{tpu_custom_call.1} parent=0
    #allocation2 [shape = 'u8[8192]{0}', space=vmem, size = 0x2000, scoped, tag = 'input window, operand 0']
    #allocation3 [shape = 's32[2]{0}', space=sflag, size = 0x8, scoped, tag = 'scoped memory for tpu_custom_call.1']
    #allocation4 [shape = 's32[2]{0}', space=sflag, size = 0x8, scoped, tag = 'scoped memory for tpu_custom_call.1']
    #allocation5 [shape = 'u8[8192]{0}', space=vmem, size = 0x2000, scoped, tag = 'input window, operand 1']
    #allocation6 [shape = 's32[2]{0}', space=sflag, size = 0x8, scoped, tag = 'scoped memory for tpu_custom_call.1']
    #allocation7 [shape = 'u8[1024]{0}', space=vmem, size = 0x400, scoped, tag = 'output window, operand 0']
    #allocation8 [shape = 'u8[1024]{0}', space=vmem, size = 0x400, scoped, tag = 'output window, operand 1']
    #allocation9 [shape = 's32[2]{0}', space=sflag, size = 0x8, scoped, tag = 'scoped memory for tpu_custom_call.1']
    #allocation10 [shape = 'u8[1024]{0}', space=vmem, size = 0x400, scoped, tag = 'output window, operand 2']
    %10 = vsyncpa [#allocation3], 0
    %s11 = scalar_lea.sflag [#allocation3], 1
    %12 = vsyncpa %s11, 0
    %13 = vsyncpa [#allocation6], 0
    %s14 = scalar_lea.sflag [#allocation6], 1
    %15 = vsyncpa %s14, 0
    %16 = vsyncpa [#allocation4], 0
    %s17 = scalar_lea.sflag [#allocation4], 1
    %18 = vsyncpa %s17, 0
    %19 = vsyncpa [#allocation9], 0
    %s20 = scalar_lea.sflag [#allocation9], 1
    %21 = vsyncpa %s20, 0
    loop: start=0, step=1, limit=4
    $region2: #{tpu_custom_call.1} parent=1 // loop_pre_header
      _
    $region3: #{tpu_custom_call.1} parent=1 // loop_header
      %s23 = sphi 0, %s27
      %p24 = scmp.ge.s32.totalorder %s23, 4
      %s30 = sphi 0, %s42
      %s31 = sphi 0, %s38
      %s32 = sphi 0, %s30
      %s33 = sphi 0, %s31
      %s34 = sphi 0, %s32
      %s35 = sphi 0, %s33
      %s47 = sphi 0, %s49
      %s50 = sphi 0, %s47
      %s51 = sphi 0, %s50
      %s67 = sphi 0, %s51
      %s75 = sphi 0, %s77
      %s78 = sphi 0, %s75
      %s79 = sphi 0, %s78
      %s95 = sphi 0, %s79
      %s101 = sphi 0, %s103
      %s104 = sphi 0, %s101
      %s105 = sphi 0, %s104
      %s121 = sphi 0, %s105
      %s127 = sphi 0, %s129
      %s130 = sphi 0, %s127
      %s131 = sphi 0, %s130
      %s147 = sphi 0, %s131
      %s153 = sphi 0, %s155
      %s156 = sphi 0, %s153
      %s157 = sphi 0, %s156
      %s173 = sphi 0, %s157
    $region4: #{tpu_custom_call.1} parent=1 // loop_header_branch
      %26 = sbr.rel (%p24) target = $region8
    $region5: #{tpu_custom_call.1} parent=1 // loop_body
      %s28 = ssub.s32 %s23, 1
      %s29 = ssub.s32 %s23, 2
      %s36 = sadd.s32 1, %s31
      %p37 = scmp.ge.s32.totalorder %s36, 1
      %s38 = scalar_select %p37, 0, %s36
      %s39 = sadd.s32 1, %s30
      %s40 = scalar_select %p37, %s39, %s30
      %p41 = scmp.ge.s32.totalorder %s40, 2
      %s42 = scalar_select %p41, 0, %s40
      %s43 = ssub.s32 %s30, %s42
      %s44 = ssub.s32 %s31, %s38
      %s45 = sor.u32 %s43, %s44
      %p46 = scmp.eq.s32.totalorder %s45, 0
      %s48 = sadd.s32 %s47, 1
      %s49 = scalar_select %p46, %s47, %s48
      %p52 = pneg %p46
      %p53 = scmp.eq.s32.totalorder %s23, 1
      %p54 = por %p52, %p53
      %p55 = scmp.ne.s32.totalorder %s47, %s50
      %p56 = scmp.eq.s32.totalorder %s23, 0
      %p57 = por %p55, %p56
      %p58 = scmp.ne.s32.totalorder %s47, %s50
      %p59 = scmp.eq.s32.totalorder %s28, 1
      %p60 = por %p58, %p59
      %p61 = scmp.ne.s32.totalorder %s50, %s51
      %p62 = scmp.eq.s32.totalorder %s28, 0
      %p63 = por %p61, %p62
      %p64 = scmp.ne.s32.totalorder %s50, %s51
      %p65 = scmp.eq.s32.totalorder %s29, 1
      %p66 = por %p64, %p65
      %p68 = scmp.ne.s32.totalorder %s51, %s67
      %p69 = scmp.eq.s32.totalorder %s29, 0
      %p70 = por %p68, %p69
      %s71 = ssub.s32 %s30, %s42
      %s72 = ssub.s32 %s31, %s38
      %s73 = sor.u32 %s71, %s72
      %p74 = scmp.eq.s32.totalorder %s73, 0
      %s76 = sadd.s32 %s75, 1
      %s77 = scalar_select %p74, %s75, %s76
      %p80 = pneg %p74
      %p81 = scmp.eq.s32.totalorder %s23, 1
      %p82 = por %p80, %p81
      %p83 = scmp.ne.s32.totalorder %s75, %s78
      %p84 = scmp.eq.s32.totalorder %s23, 0
      %p85 = por %p83, %p84
      %p86 = scmp.ne.s32.totalorder %s75, %s78
      %p87 = scmp.eq.s32.totalorder %s28, 1
      %p88 = por %p86, %p87
      %p89 = scmp.ne.s32.totalorder %s78, %s79
      %p90 = scmp.eq.s32.totalorder %s28, 0
      %p91 = por %p89, %p90
      %p92 = scmp.ne.s32.totalorder %s78, %s79
      %p93 = scmp.eq.s32.totalorder %s29, 1
      %p94 = por %p92, %p93
      %p96 = scmp.ne.s32.totalorder %s79, %s95
      %p97 = scmp.eq.s32.totalorder %s29, 0
      %p98 = por %p96, %p97
      %s99 = ssub.s32 %s30, %s42
      %p100 = scmp.eq.s32.totalorder %s99, 0
      %s102 = sadd.s32 %s101, 1
      %s103 = scalar_select %p100, %s101, %s102
      %p106 = pneg %p100
      %p107 = scmp.eq.s32.totalorder %s23, 1
      %p108 = por %p106, %p107
      %p109 = scmp.ne.s32.totalorder %s101, %s104
      %p110 = scmp.eq.s32.totalorder %s23, 0
      %p111 = por %p109, %p110
      %p112 = scmp.ne.s32.totalorder %s101, %s104
      %p113 = scmp.eq.s32.totalorder %s28, 1
      %p114 = por %p112, %p113
      %p115 = scmp.ne.s32.totalorder %s104, %s105
      %p116 = scmp.eq.s32.totalorder %s28, 0
      %p117 = por %p115, %p116
      %p118 = scmp.ne.s32.totalorder %s104, %s105
      %p119 = scmp.eq.s32.totalorder %s29, 1
      %p120 = por %p118, %p119
      %p122 = scmp.ne.s32.totalorder %s105, %s121
      %p123 = scmp.eq.s32.totalorder %s29, 0
      %p124 = por %p122, %p123
      %s125 = ssub.s32 %s30, %s42
      %p126 = scmp.eq.s32.totalorder %s125, 0
      %s128 = sadd.s32 %s127, 1
      %s129 = scalar_select %p126, %s127, %s128
      %p132 = pneg %p126
      %p133 = scmp.eq.s32.totalorder %s23, 1
      %p134 = por %p132, %p133
      %p135 = scmp.ne.s32.totalorder %s127, %s130
      %p136 = scmp.eq.s32.totalorder %s23, 0
      %p137 = por %p135, %p136
      %p138 = scmp.ne.s32.totalorder %s127, %s130
      %p139 = scmp.eq.s32.totalorder %s28, 1
      %p140 = por %p138, %p139
      %p141 = scmp.ne.s32.totalorder %s130, %s131
      %p142 = scmp.eq.s32.totalorder %s28, 0
      %p143 = por %p141, %p142
      %p144 = scmp.ne.s32.totalorder %s130, %s131
      %p145 = scmp.eq.s32.totalorder %s29, 1
      %p146 = por %p144, %p145
      %p148 = scmp.ne.s32.totalorder %s131, %s147
      %p149 = scmp.eq.s32.totalorder %s29, 0
      %p150 = por %p148, %p149
      %s151 = ssub.s32 %s30, %s42
      %p152 = scmp.eq.s32.totalorder %s151, 0
      %s154 = sadd.s32 %s153, 1
      %s155 = scalar_select %p152, %s153, %s154
      %p158 = pneg %p152
      %p159 = scmp.eq.s32.totalorder %s23, 1
      %p160 = por %p158, %p159
      %p161 = scmp.ne.s32.totalorder %s153, %s156
      %p162 = scmp.eq.s32.totalorder %s23, 0
      %p163 = por %p161, %p162
      %p164 = scmp.ne.s32.totalorder %s153, %s156
      %p165 = scmp.eq.s32.totalorder %s28, 1
      %p166 = por %p164, %p165
      %p167 = scmp.ne.s32.totalorder %s156, %s157
      %p168 = scmp.eq.s32.totalorder %s28, 0
      %p169 = por %p167, %p168
      %p170 = scmp.ne.s32.totalorder %s156, %s157
      %p171 = scmp.eq.s32.totalorder %s29, 1
      %p172 = por %p170, %p171
      %p174 = scmp.ne.s32.totalorder %s157, %s173
      %p175 = scmp.eq.s32.totalorder %s29, 0
      %p176 = por %p174, %p175
      %p177 = scmp.le.s32.totalorder 1, %s23
      %p178 = scmp.lt.s32.totalorder %s23, 3
      %p179 = pnand %p177, %p178
      %p180 = pneg %p179
      // Predicated region
      $region9: #{tpu_custom_call.1} parent=5 // pred_check
        _
      $region10: #{tpu_custom_call.1} parent=5 // pred_check_branch
        %182 = sbr.rel (%p179) target = $region12
      $region11: #{tpu_custom_call.1} parent=5 // pred_region
        %s183 = ssub.s32 %s23, 1
      $region12: #{tpu_custom_call.1} parent=5 // pred_fallthru
        _
      %p184 = scmp.lt.s32.totalorder %s23, 2
      // Predicated region
      $region13: #{tpu_custom_call.1} parent=5 // pred_check
        %p185 = pneg %p184
      $region14: #{tpu_custom_call.1} parent=5 // pred_check_branch
        %187 = sbr.rel (%p185) target = $region16
      $region15: #{tpu_custom_call.1} parent=5 // pred_region
        // Predicated region
        $region17: #{tpu_custom_call.1} parent=15 // pred_check
          %p188 = pneg %p57
        $region18: #{tpu_custom_call.1} parent=15 // pred_check_branch
          %190 = sbr.rel (%p188) target = $region20
        $region19: #{tpu_custom_call.1} parent=15 // pred_region
          %s191 = sand.u32 %s47, 1
          %s192 = scalar_lea.sflag [#allocation3], %s191
          %s193 = sand.u32 %s47, 1
          %s194 = smul.addr %s193, 8
          %s195 = scalar_lea.vmem [#allocation2], %s194
          %s197 = ssub.s32 128, 128
          %198 = vsyncadd %s192, %s197
          %s199 = sadd.s32 %s31, %s30
          %s200 = smul.addr %s199, 128
          %s201 = scalar_lea.hbm %s0, %s200
          %s203 = sshll.u32 %s195, 4
          %s204 = int_to_ptr.vmem [resolvable:$true] %s203
          %206 = dma.hbm_to_vmem [thread:$0]  %s201, 128, %s204, %s192
        $region20: #{tpu_custom_call.1} parent=15 // pred_fallthru
          _
        // Predicated region
        $region21: #{tpu_custom_call.1} parent=15 // pred_check
          %p207 = pneg %p85
        $region22: #{tpu_custom_call.1} parent=15 // pred_check_branch
          %209 = sbr.rel (%p207) target = $region24
        $region23: #{tpu_custom_call.1} parent=15 // pred_region
          %s210 = sand.u32 %s75, 1
          %s211 = scalar_lea.sflag [#allocation6], %s210
          %s212 = sand.u32 %s75, 1
          %s213 = smul.addr %s212, 8
          %s214 = scalar_lea.vmem [#allocation5], %s213
          %s216 = ssub.s32 128, 128
          %217 = vsyncadd %s211, %s216
          %s218 = sadd.s32 %s31, %s30
          %s219 = smul.addr %s218, 128
          %s220 = scalar_lea.hbm %s1, %s219
          %s222 = sshll.u32 %s214, 4
          %s223 = int_to_ptr.vmem [resolvable:$true] %s222
          %225 = dma.hbm_to_vmem [thread:$0]  %s220, 128, %s223, %s211
        $region24: #{tpu_custom_call.1} parent=15 // pred_fallthru
          _
      $region16: #{tpu_custom_call.1} parent=5 // pred_fallthru
        _
      %p226 = scmp.le.s32.totalorder 1, %s23
      %p227 = scmp.lt.s32.totalorder %s23, 3
      %p228 = pnand %p226, %p227
      %p229 = pneg %p228
      // Predicated region
      $region25: #{tpu_custom_call.1} parent=5 // pred_check
        _
      $region26: #{tpu_custom_call.1} parent=5 // pred_check_branch
        %231 = sbr.rel (%p228) target = $region28
      $region27: #{tpu_custom_call.1} parent=5 // pred_region
        %s232 = ssub.s32 %s23, 1
        %s233 = sand.u32 %s50, 1
        %s234 = scalar_lea.sflag [#allocation3], %s233
        %s235 = sand.u32 %s50, 1
        %s236 = smul.addr %s235, 8
        %s237 = scalar_lea.vmem [#allocation2], %s236
        // Predicated region
        $region29: #{tpu_custom_call.1} parent=27 // pred_check
          %p238 = pneg %p63
        $region30: #{tpu_custom_call.1} parent=27 // pred_check_branch
          %240 = sbr.rel (%p238) target = $region32
        $region31: #{tpu_custom_call.1} parent=27 // pred_region
          %241 = dma.done %s234, 128
        $region32: #{tpu_custom_call.1} parent=27 // pred_fallthru
          _
        %s242 = sand.u32 %s78, 1
        %s243 = scalar_lea.sflag [#allocation6], %s242
        %s244 = sand.u32 %s78, 1
        %s245 = smul.addr %s244, 8
        %s246 = scalar_lea.vmem [#allocation5], %s245
        // Predicated region
        $region33: #{tpu_custom_call.1} parent=27 // pred_check
          %p247 = pneg %p91
        $region34: #{tpu_custom_call.1} parent=27 // pred_check_branch
          %249 = sbr.rel (%p247) target = $region36
        $region35: #{tpu_custom_call.1} parent=27 // pred_region
          %250 = dma.done %s243, 128
        $region36: #{tpu_custom_call.1} parent=27 // pred_fallthru
          _
        %s251 = sand.u32 %s50, 1
        %s252 = scalar_lea.sflag [#allocation3], %s251
        %s253 = sand.u32 %s50, 1
        %s254 = smul.addr %s253, 8
        %s255 = scalar_lea.vmem [#allocation2], %s254
        %p256 = pneg %p63
        %p257 = pneg %p60
        %s258 = sand.u32 %s78, 1
        %s259 = scalar_lea.sflag [#allocation6], %s258
        %s260 = sand.u32 %s78, 1
        %s261 = smul.addr %s260, 8
        %s262 = scalar_lea.vmem [#allocation5], %s261
        %p263 = pneg %p91
        %p264 = pneg %p88
        %p265 = pneg %p117
        %p266 = pneg %p114
        %s267 = sand.u32 %s104, 1
        %s268 = scalar_lea.sflag [#allocation4], %s267
        %s269 = sand.u32 %s104, 1
        %s270 = scalar_lea.vmem [#allocation7], %s269
        %p271 = pneg %p143
        %p272 = pneg %p140
        %s273 = sand.u32 %s28, 1
        %s274 = scalar_lea.sflag [#allocation9], %s273
        %s275 = sand.u32 %s130, 1
        %s276 = scalar_lea.vmem [#allocation8], %s275
        %p277 = pneg %p169
        %p278 = pneg %p166
        %s279 = sand.u32 %s28, 1
        %s280 = scalar_lea.sflag [#allocation9], %s279
        %s281 = sand.u32 %s156, 1
        %s282 = scalar_lea.vmem [#allocation10], %s281
        %p283 = scmp.eq.s32.totalorder %s33, 0
        // Predicated region
        $region37: #{tpu_custom_call.1} parent=27 // pred_check
          %p284 = pneg %p283
        $region38: #{tpu_custom_call.1} parent=27 // pred_check_branch
          %286 = sbr.rel (%p284) target = $region40
        $region39: #{tpu_custom_call.1} parent=27 // pred_region
          %287 = vst [vmem:[%s270] sm:$0x1] 0.0
          %288 = vst [vmem:[%s276] sm:$0x1] 0.0
          %289 = vst [vmem:[%s282] sm:$0x1] 0.0
        $region40: #{tpu_custom_call.1} parent=27 // pred_fallthru
          _
        %v290 = vld [vmem:[%s237] sm:$0xff]
        %v291 = vld [vmem:[%s246] sm:$0xff]
        %v292 = vld [vmem:[%s270] sm:$0x1]
        %v293 = vrot.slane %v291, 4
        %v294 = vadd.f32 %v291, %v293
        %v295 = vrot.slane %v294, 2
        %v296 = vadd.f32 %v294, %v295
        %v297 = vrot.slane %v296, 1
        %v298 = vadd.f32 %v296, %v297
        %v299 = vadd.f32 %v292, %v298
        %300 = vst [vmem:[%s270] sm:$0x1] %v299
        %v301 = vld [vmem:[%s276] sm:$0x1]
        %v302 = vrot.slane %v290, 4
        %v303 = vadd.f32 %v290, %v302
        %v304 = vrot.slane %v303, 2
        %v305 = vadd.f32 %v303, %v304
        %v306 = vrot.slane %v305, 1
        %v307 = vadd.f32 %v305, %v306
        %v308 = vadd.f32 %v301, %v307
        %309 = vst [vmem:[%s276] sm:$0x1] %v308
        %v310 = vld [vmem:[%s282] sm:$0x1]
        %v311 = vmul.f32 %v290, %v291
        %v312 = vrot.slane %v311, 4
        %v313 = vadd.f32 %v311, %v312
        %v314 = vrot.slane %v313, 2
        %v315 = vadd.f32 %v313, %v314
        %v316 = vrot.slane %v315, 1
        %v317 = vadd.f32 %v315, %v316
        %v318 = vadd.f32 %v310, %v317
        %319 = vst [vmem:[%s282] sm:$0x1] %v318
        %s320 = sand.u32 %s104, 1
        %s321 = scalar_lea.sflag [#allocation4], %s320
        %s322 = sand.u32 %s104, 1
        %s323 = scalar_lea.vmem [#allocation7], %s322
        %s324 = sand.u32 %s28, 1
        %s325 = scalar_lea.sflag [#allocation9], %s324
        %s326 = sand.u32 %s130, 1
        %s327 = scalar_lea.vmem [#allocation8], %s326
        %s328 = sand.u32 %s28, 1
        %s329 = scalar_lea.sflag [#allocation9], %s328
        %s330 = sand.u32 %s156, 1
        %s331 = scalar_lea.vmem [#allocation10], %s330
        // Predicated region
        $region41: #{tpu_custom_call.1} parent=27 // pred_check
          %p332 = pneg %p114
        $region42: #{tpu_custom_call.1} parent=27 // pred_check_branch
          %334 = sbr.rel (%p332) target = $region44
        $region43: #{tpu_custom_call.1} parent=27 // pred_region
          %s336 = ssub.s32 16, 16
          %337 = vsyncadd %s321, %s336
          %s338 = smul.addr %s32, 16
          %s339 = scalar_lea.hbm %s2, %s338
          %s341 = sshll.u32 %s323, 4
          %s342 = int_to_ptr.vmem [resolvable:$true] %s341
          %344 = dma.vmem_to_hbm [thread:$0]  %s342, 16, %s339, %s321
        $region44: #{tpu_custom_call.1} parent=27 // pred_fallthru
          _
        // Predicated region
        $region45: #{tpu_custom_call.1} parent=27 // pred_check
          %p345 = pneg %p140
        $region46: #{tpu_custom_call.1} parent=27 // pred_check_branch
          %347 = sbr.rel (%p345) target = $region48
        $region47: #{tpu_custom_call.1} parent=27 // pred_region
          %s349 = ssub.s32 16, 16
          %350 = vsyncadd %s325, %s349
          %s351 = smul.addr %s32, 16
          %s352 = scalar_lea.hbm %s3, %s351
          %s354 = sshll.u32 %s327, 4
          %s355 = int_to_ptr.vmem [resolvable:$true] %s354
          %357 = dma.vmem_to_hbm [thread:$0]  %s355, 16, %s352, %s325
        $region48: #{tpu_custom_call.1} parent=27 // pred_fallthru
          _
        // Predicated region
        $region49: #{tpu_custom_call.1} parent=27 // pred_check
          %p358 = pneg %p166
        $region50: #{tpu_custom_call.1} parent=27 // pred_check_branch
          %360 = sbr.rel (%p358) target = $region52
        $region51: #{tpu_custom_call.1} parent=27 // pred_region
          %s362 = ssub.s32 16, 16
          %363 = vsyncadd %s329, %s362
          %s364 = smul.addr %s32, 16
          %s365 = scalar_lea.hbm %s4, %s364
          %s367 = sshll.u32 %s331, 4
          %s368 = int_to_ptr.vmem [resolvable:$true] %s367
          %370 = dma.vmem_to_hbm [thread:$0]  %s368, 16, %s365, %s329
        $region52: #{tpu_custom_call.1} parent=27 // pred_fallthru
          _
      $region28: #{tpu_custom_call.1} parent=5 // pred_fallthru
        _
      %p371 = scmp.le.s32.totalorder 2, %s23
      // Predicated region
      $region53: #{tpu_custom_call.1} parent=5 // pred_check
        %p372 = pneg %p371
      $region54: #{tpu_custom_call.1} parent=5 // pred_check_branch
        %374 = sbr.rel (%p372) target = $region56
      $region55: #{tpu_custom_call.1} parent=5 // pred_region
        %s375 = ssub.s32 %s23, 2
        // Predicated region
        $region57: #{tpu_custom_call.1} parent=55 // pred_check
          %p376 = pneg %p120
        $region58: #{tpu_custom_call.1} parent=55 // pred_check_branch
          %378 = sbr.rel (%p376) target = $region60
        $region59: #{tpu_custom_call.1} parent=55 // pred_region
          %s379 = sand.u32 %s105, 1
          %s380 = scalar_lea.sflag [#allocation4], %s379
          %s381 = sand.u32 %s105, 1
          %s382 = scalar_lea.vmem [#allocation7], %s381
          %383 = dma.done %s380, 16
        $region60: #{tpu_custom_call.1} parent=55 // pred_fallthru
          _
        // Predicated region
        $region61: #{tpu_custom_call.1} parent=55 // pred_check
          %p384 = pneg %p146
        $region62: #{tpu_custom_call.1} parent=55 // pred_check_branch
          %386 = sbr.rel (%p384) target = $region64
        $region63: #{tpu_custom_call.1} parent=55 // pred_region
          %s387 = sand.u32 %s29, 1
          %s388 = scalar_lea.sflag [#allocation9], %s387
          %s389 = sand.u32 %s131, 1
          %s390 = scalar_lea.vmem [#allocation8], %s389
          %391 = dma.done %s388, 16
        $region64: #{tpu_custom_call.1} parent=55 // pred_fallthru
          _
        // Predicated region
        $region65: #{tpu_custom_call.1} parent=55 // pred_check
          %p392 = pneg %p172
        $region66: #{tpu_custom_call.1} parent=55 // pred_check_branch
          %394 = sbr.rel (%p392) target = $region68
        $region67: #{tpu_custom_call.1} parent=55 // pred_region
          %s395 = sand.u32 %s29, 1
          %s396 = scalar_lea.sflag [#allocation9], %s395
          %s397 = sand.u32 %s157, 1
          %s398 = scalar_lea.vmem [#allocation10], %s397
          %399 = dma.done %s396, 16
        $region68: #{tpu_custom_call.1} parent=55 // pred_fallthru
          _
      $region56: #{tpu_custom_call.1} parent=5 // pred_fallthru
        _
    $region6: #{tpu_custom_call.1} parent=1 // loop_footer
      %s27 = sadd.s32 1, %s23
    $region7: #{tpu_custom_call.1} parent=1 // loop_footer_branch
      %22 = sbr.rel target = $region3
    $region8: #{tpu_custom_call.1} parent=1 // loop_exit
      _
    %400 = vsyncpa [#allocation3], 1
    %s401 = scalar_lea.sflag [#allocation3], 1
    %402 = vsyncpa %s401, 1
    %403 = vsyncpa [#allocation6], 1
    %s404 = scalar_lea.sflag [#allocation6], 1
    %405 = vsyncpa %s404, 1
    %406 = vsyncpa [#allocation4], 1
    %s407 = scalar_lea.sflag [#allocation4], 1
    %408 = vsyncpa %s407, 1
    %409 = vsyncpa [#allocation9], 1
    %s410 = scalar_lea.sflag [#allocation9], 1
    %411 = vsyncpa %s410, 1

</llo_original>
